<compile_context>
chip_gen: v6e
topology: v6e:2x2x1
jax: 0.10.0
libtpu: 0.0.40
codegen_flags: <defaults>
</compile_context>

<pallas_src>
import functools

import jax
import jax.numpy as jnp
from jax import lax
from jax.experimental import pallas as pl
from jax.experimental.pallas import tpu as pltpu


def noisenet_kernel(x_ref, w1T_ref, b1_ref, w2r_ref, b2_ref, o_ref, *, lane_chunk):
    # x_ref:  (TB, D)  streamed batch block (batch on sublanes in VMEM)
    # w1T_ref:(H, D), b1_ref:(H, 1), w2r_ref:(1, H), b2_ref:(1, 1)  -- VMEM-resident
    # o_ref:  (1, TB)  lane-dense output (batch on lanes)
    TB = o_ref.shape[-1]

    def one_chunk(x_chunk):
        # fc1 on the MXU, contracting D with D: (H, D) x (C, D) -> (H, C).
        h = lax.dot_general(
            w1T_ref[...], x_chunk,
            dimension_numbers=(((1,), (1,)), ((), ())),
            preferred_element_type=jnp.float32,
            precision=lax.Precision.HIGHEST)
        h = jnp.maximum(h + b1_ref[...], 0.0)            # bias (lane-broadcast) + ReLU
        # fc2 (out_features == 1) also on the MXU: (1, H) @ (H, C) -> (1, C).
        y = jnp.dot(w2r_ref[...], h,
                    preferred_element_type=jnp.float32,
                    precision=lax.Precision.HIGHEST)
        return jnp.exp(y + b2_ref[...])                  # noise > 0

    if TB <= lane_chunk:
        o_ref[...] = one_chunk(x_ref[...])
    else:
        # TB is a multiple of lane_chunk (enforced by the wrapper). Static,
        # lane-aligned chunking keeps intermediates vreg/VMEM-small.
        n_chunks = TB // lane_chunk
        for c in range(n_chunks):
            lo = c * lane_chunk
            o_ref[:, lo:lo + lane_chunk] = one_chunk(x_ref[lo:lo + lane_chunk, :])


def _round_up(v, m):
    return ((v + m - 1) // m) * m


def _vmem_budget_bytes(TB, D, H, lane_chunk):
    """Conservative (lane-padded) VMEM estimate for the kernel's buffers."""
    x_buf = 2 * _round_up(TB, 8) * _round_up(D, 128) * 4       # double-buffered x blocks
    o_buf = 2 * 8 * _round_up(TB, 128) * 4                     # double-buffered (1, TB) out
    w_buf = (_round_up(H, 8) * _round_up(D, 128)                # w1T
             + _round_up(H, 8) * 128                            # b1
             + 8 * _round_up(H, 128)                            # w2 row
             + 8 * 128) * 4                                     # b2
    c = min(TB, lane_chunk)
    tmp = 6 * _round_up(H, 8) * _round_up(c, 128) * 4           # live (H, chunk) temporaries
    return x_buf + o_buf + w_buf + tmp + (2 << 20)              # + compiler scratch slack


def noisenet_forward(x, w1, b1, w2, b2, *, block_b=32768, lane_chunk=1024):
    """x: (B, D) f32; w1: (D, H); b1: (H,); w2: (H, 1); b2: (1,). Returns (B,).

    Weight layout matches `y = x @ w + b` (i.e. PyTorch weights transposed).
    """
    B, D = x.shape
    H = w1.shape[1]

    # Tiny one-time weight layout plumbing only; x is NOT transposed/copied.
    w1T = jnp.asarray(w1).T                 # (H, D)
    b1c = jnp.asarray(b1).reshape(H, 1)
    w2r = jnp.asarray(w2).reshape(1, H)
    b2c = jnp.asarray(b2).reshape(1, 1)

    if B <= lane_chunk:
        TB = B                              # single block, single chunk
    else:
        assert lane_chunk >= 128 and lane_chunk % 128 == 0, \
            "lane_chunk must be a multiple of 128"
        assert block_b % lane_chunk == 0, "block_b must be a multiple of lane_chunk"
        # Aim for >= 2 grid steps (lets the 'parallel' batch axis split across
        # v7x's 2 TensorCores) while keeping TB a multiple of lane_chunk.
        tb = pl.cdiv(pl.cdiv(B, 2), lane_chunk) * lane_chunk
        TB = max(lane_chunk, min(block_b, tb))
    grid = (pl.cdiv(B, TB),)

    vmem_limit = int(min(max(_vmem_budget_bytes(TB, D, H, lane_chunk), 8 << 20), 60 << 20))

    out = pl.pallas_call(
        functools.partial(noisenet_kernel, lane_chunk=lane_chunk),
        out_shape=jax.ShapeDtypeStruct((1, B), jnp.float32),
        grid_spec=pltpu.PrefetchScalarGridSpec(
            num_scalar_prefetch=0,
            grid=grid,
            in_specs=[
                pl.BlockSpec((TB, D), lambda i: (i, 0)),   # streamed, double-buffered x
                pl.BlockSpec((H, D), lambda i: (0, 0)),    # VMEM-resident weights/biases
                pl.BlockSpec((H, 1), lambda i: (0, 0)),
                pl.BlockSpec((1, H), lambda i: (0, 0)),
                pl.BlockSpec((1, 1), lambda i: (0, 0)),
            ],
            out_specs=pl.BlockSpec((1, TB), lambda i: (0, i)),   # lane-dense output
        ),
        compiler_params=pltpu.CompilerParams(
            dimension_semantics=("parallel",),
            vmem_limit_bytes=vmem_limit),
    )(x, w1T, b1c, w2r, b2c)

    return out[0]   # (B,) — the squeeze(-1) glue


def init_params(key, input_dim, hidden=32):
    """PyTorch-style uniform(-1/sqrt(fan_in), 1/sqrt(fan_in)) init (deterministic)."""
    k1, k2, k3, k4 = jax.random.split(key, 4)
    bound1 = 1.0 / jnp.sqrt(jnp.float32(input_dim))
    bound2 = 1.0 / jnp.sqrt(jnp.float32(hidden))
    w1 = jax.random.uniform(k1, (input_dim, hidden), jnp.float32, -bound1, bound1)
    b1 = jax.random.uniform(k2, (hidden,), jnp.float32, -bound1, bound1)
    w2 = jax.random.uniform(k3, (hidden, 1), jnp.float32, -bound2, bound2)
    b2 = jax.random.uniform(k4, (1,), jnp.float32, -bound2, bound2)
    return w1, b1, w2, b2


def _ref(x, w1, b1, w2, b2):
    h = jnp.maximum(jnp.dot(x, w1, precision=lax.Precision.HIGHEST) + b1, 0.0)
    y = jnp.dot(h, w2, precision=lax.Precision.HIGHEST) + b2
    return jnp.exp(y)[:, 0]


if __name__ == "__main__":
    key = jax.random.PRNGKey(0)
    kx1, kx2, kp = jax.random.split(key, 3)

    D, H = 16, 32
    w1, b1, w2, b2 = init_params(kp, D, H)

    # Case 1: tiny batch -> single grid step, single lane chunk.
    x_small = jax.random.normal(kx1, (8, D), dtype=jnp.float32)
    noise_small = noisenet_forward(x_small, w1, b1, w2, b2)
    jax.block_until_ready(noise_small)
    assert noise_small.shape == (8,)
    assert jnp.allclose(noise_small, _ref(x_small, w1, b1, w2, b2),
                        rtol=1e-5, atol=1e-5)

    # Case 2: exercises the batch grid (2 steps) AND the in-kernel lane-chunk loop
    # (2 chunks per 256-wide block) at small shapes.
    x_big = jax.random.normal(kx2, (512, D), dtype=jnp.float32)
    noise_big = noisenet_forward(x_big, w1, b1, w2, b2, block_b=256, lane_chunk=128)
    jax.block_until_ready(noise_big)
    assert noise_big.shape == (512,)
    assert jnp.allclose(noise_big, _ref(x_big, w1, b1, w2, b2),
                        rtol=1e-5, atol=1e-5)

    print("KERNEL_OK")
</pallas_src>

<mosaic_0001>
module attributes {stable_mosaic.version = 11 : i64} {
  func.func @noisenet_kernel(%arg0: i32, %arg1: memref<8x16xf32, #tpu.memory_space<vmem>>, %arg2: memref<32x16xf32, #tpu.memory_space<vmem>>, %arg3: memref<32x1xf32, #tpu.memory_space<vmem>>, %arg4: memref<1x32xf32, #tpu.memory_space<vmem>>, %arg5: memref<1x1xf32, #tpu.memory_space<vmem>>, %arg6: memref<1x8xf32, #tpu.memory_space<vmem>>) attributes {dimension_semantics = [#tpu.dimension_semantics<parallel>], iteration_bounds = array<i64: 1>, scalar_prefetch = 0 : i64, scratch_operands = 0 : i64, tpu.core_type = #tpu.core_type<tc>, window_params = [{transform_indices = @transform_0, window_bounds = array<i64: 8, 16>}, {pipeline_mode = #tpu.pipeline_mode<synchronous>, transform_indices = @transform_1, window_bounds = array<i64: 32, 16>}, {pipeline_mode = #tpu.pipeline_mode<synchronous>, transform_indices = @transform_2, window_bounds = array<i64: 32, 1>}, {pipeline_mode = #tpu.pipeline_mode<synchronous>, transform_indices = @transform_3, window_bounds = array<i64: 1, 32>}, {pipeline_mode = #tpu.pipeline_mode<synchronous>, transform_indices = @transform_4, window_bounds = array<i64: 1, 1>}, {transform_indices = @transform_5, window_bounds = array<i64: 1, 8>}]} {
    %c0 = arith.constant 0 : index
    %c0_0 = arith.constant 0 : index
    %0 = vector.load %arg1[%c0, %c0_0] : memref<8x16xf32, #tpu.memory_space<vmem>>, vector<8x16xf32>
    %c0_1 = arith.constant 0 : index
    %c0_2 = arith.constant 0 : index
    %1 = vector.load %arg2[%c0_1, %c0_2] : memref<32x16xf32, #tpu.memory_space<vmem>>, vector<32x16xf32>
    %cst = arith.constant dense<0.000000e+00> : vector<32x8xf32>
    %2 = tpu.matmul %1, %0, %cst {dimension_numbers = #tpu.dot_dimension_numbers<[1], [1], [0], [0], [0, 0, 1, 0], [], []>, precision = #tpu.contract_precision<fp32>} : vector<32x16xf32>, vector<8x16xf32>, vector<32x8xf32> -> vector<32x8xf32>
    %c0_3 = arith.constant 0 : index
    %c0_4 = arith.constant 0 : index
    %3 = vector.load %arg3[%c0_3, %c0_4] : memref<32x1xf32, #tpu.memory_space<vmem>>, vector<32x1xf32>
    %4 = vector.broadcast %3 : vector<32x1xf32> to vector<32x8xf32>
    %5 = arith.addf %2, %4 : vector<32x8xf32>
    %cst_5 = arith.constant 0.000000e+00 : f32
    %6 = vector.broadcast %cst_5 : f32 to vector<32x8xf32>
    %7 = arith.maximumf %5, %6 : vector<32x8xf32>
    %c0_6 = arith.constant 0 : index
    %c0_7 = arith.constant 0 : index
    %8 = vector.load %arg4[%c0_6, %c0_7] : memref<1x32xf32, #tpu.memory_space<vmem>>, vector<1x32xf32>
    %cst_8 = arith.constant dense<0.000000e+00> : vector<1x8xf32>
    %9 = tpu.matmul %8, %7, %cst_8 {dimension_numbers = #tpu.dot_dimension_numbers<[1], [0], [0], [1], [0, 0, 1, 1], [], []>, precision = #tpu.contract_precision<fp32>} : vector<1x32xf32>, vector<32x8xf32>, vector<1x8xf32> -> vector<1x8xf32>
    %c0_9 = arith.constant 0 : index
    %c0_10 = arith.constant 0 : index
    %10 = vector.load %arg5[%c0_9, %c0_10] : memref<1x1xf32, #tpu.memory_space<vmem>>, vector<1x1xf32>
    %11 = vector.broadcast %10 : vector<1x1xf32> to vector<1x8xf32>
    %12 = arith.addf %9, %11 : vector<1x8xf32>
    %13 = math.exp %12 : vector<1x8xf32>
    %c0_11 = arith.constant 0 : index
    %c0_12 = arith.constant 0 : index
    %14 = vector.load %arg6[%c0_11, %c0_12] : memref<1x8xf32, #tpu.memory_space<vmem>>, vector<1x8xf32>
    tpu.vector_store %arg6[%c0_11, %c0_12], %13 {strides = array<i32>} : memref<1x8xf32, #tpu.memory_space<vmem>>, vector<1x8xf32>,
    return
  }
  func.func @transform_0(%arg0: i32) -> (i32, i32) {
    %c0_i32 = arith.constant 0 : i32
    %c0_i32_0 = arith.constant 0 : i32
    return %arg0, %c0_i32 : i32, i32
  }
  func.func @transform_1(%arg0: i32) -> (i32, i32) {
    %c0_i32 = arith.constant 0 : i32
    %c0_i32_0 = arith.constant 0 : i32
    %c0_i32_1 = arith.constant 0 : i32
    return %c0_i32, %c0_i32_0 : i32, i32
  }
  func.func @transform_2(%arg0: i32) -> (i32, i32) {
    %c0_i32 = arith.constant 0 : i32
    %c0_i32_0 = arith.constant 0 : i32
    %c0_i32_1 = arith.constant 0 : i32
    return %c0_i32, %c0_i32_0 : i32, i32
  }
  func.func @transform_3(%arg0: i32) -> (i32, i32) {
    %c0_i32 = arith.constant 0 : i32
    %c0_i32_0 = arith.constant 0 : i32
    %c0_i32_1 = arith.constant 0 : i32
    return %c0_i32, %c0_i32_0 : i32, i32
  }
  func.func @transform_4(%arg0: i32) -> (i32, i32) {
    %c0_i32 = arith.constant 0 : i32
    %c0_i32_0 = arith.constant 0 : i32
    %c0_i32_1 = arith.constant 0 : i32
    return %c0_i32, %c0_i32_0 : i32, i32
  }
  func.func @transform_5(%arg0: i32) -> (i32, i32) {
    %c0_i32 = arith.constant 0 : i32
    %c0_i32_0 = arith.constant 0 : i32
    return %c0_i32, %arg0 : i32, i32
  }
}

</mosaic_0001>

<llo_original>
// kernel: tpu_custom_call.1
$region0: #{tpu_custom_call.1}
  #allocation0 [shape = 'u32[]', space=smem, size = 0x4, offset = 0x4, fixed_abs, tag = 'smem constant byte address 0x4 - core index']
  #allocation1 [shape = 'u32[144,128]{1,0:T(1,128)}', space=vmem, size = 0x12000, scoped, tag = 'internal scratch']
  #allocation2 [shape = 'f32[1,1]{1,0:T(1,128)S(1)}', space=vmem, size = 0x200, scoped, tag = 'scoped memory for tpu_custom_call.1']
  %s0 = inlined_call_operand.vmem [shape: f32[8,16], index: 0, kind: input, shape index: {}]
  %s1 = inlined_call_operand.vmem [shape: f32[32,16], index: 1, kind: input, shape index: {}]
  %s2 = inlined_call_operand.vmem [shape: f32[32,1], index: 2, kind: input, shape index: {}]
  %s3 = inlined_call_operand.vmem [shape: f32[1,32], index: 3, kind: input, shape index: {}]
  %s4 = inlined_call_operand.<no memory space> [shape: f32[1,1], index: 4, kind: input, shape index: {}]
  %s5 = inlined_call_operand.hbm [shape: f32[1,8], index: 5, kind: output, shape index: {}]
  %s6 = sld [smem:[#allocation0]]
  $region30: #{tpu_custom_call.1} parent=0
    _
  %s8 = ssub.s32 1, %s6
  %s9 = scalar_select 0, %s8, %s6
  %v10 = vstv %s4
  %11 = vst [vmem:[#allocation2] sm:$0x1] %v10
  $region1: #{tpu_custom_call.1} parent=0
    #allocation3 [shape = 'u8[512]{0}', space=vmem, size = 0x400, scoped, tag = 'output window, operand 0, single buffered']
    #allocation4 [shape = 's32[1]{0}', space=sflag, size = 0x4, scoped, tag = 'scoped memory for tpu_custom_call.1']
    %12 = vsyncpa [#allocation4], 0
    // Predicated region
    $region2: #{tpu_custom_call.1} parent=1 // pred_check
      _
    $region3: #{tpu_custom_call.1} parent=1 // pred_check_branch
      %14 = sbr.rel (0) target = $region5
    $region4: #{tpu_custom_call.1} parent=1 // pred_region
      _
    $region5: #{tpu_custom_call.1} parent=1 // pred_fallthru
      _
    // Predicated region
    $region6: #{tpu_custom_call.1} parent=1 // pred_check
      _
    $region7: #{tpu_custom_call.1} parent=1 // pred_check_branch
      %16 = sbr.rel (0) target = $region9
    $region8: #{tpu_custom_call.1} parent=1 // pred_region
      _
    $region9: #{tpu_custom_call.1} parent=1 // pred_fallthru
      _
    // Predicated region
    $region10: #{tpu_custom_call.1} parent=1 // pred_check
      _
    $region11: #{tpu_custom_call.1} parent=1 // pred_check_branch
      %18 = sbr.rel (0) target = $region13
    $region12: #{tpu_custom_call.1} parent=1 // pred_region
      _
    $region13: #{tpu_custom_call.1} parent=1 // pred_fallthru
      _
    // Predicated region
    $region14: #{tpu_custom_call.1} parent=1 // pred_check
      _
    $region15: #{tpu_custom_call.1} parent=1 // pred_check_branch
      %20 = sbr.rel (0) target = $region17
    $region16: #{tpu_custom_call.1} parent=1 // pred_region
      _
    $region17: #{tpu_custom_call.1} parent=1 // pred_fallthru
      _
    // Predicated region
    $region18: #{tpu_custom_call.1} parent=1 // pred_check
      _
    $region19: #{tpu_custom_call.1} parent=1 // pred_check_branch
      %22 = sbr.rel (0) target = $region21
    $region20: #{tpu_custom_call.1} parent=1 // pred_region
      _
    $region21: #{tpu_custom_call.1} parent=1 // pred_fallthru
      _
    %v23 = vld [vmem:[%s0] sm:$0xff]
    %v24 = vld [vmem:[%s1] sm:$0xff]
    %v25 = vld [vmem:[%s1 + $0x8] sm:$0xff]
    %v26 = vld [vmem:[%s1 + $0x10] sm:$0xff]
    %v27 = vld [vmem:[%s1 + $0x18] sm:$0xff]
    %v28 = vld [vmem:[%s2] sm:$0xff]
    %v29 = vld [vmem:[%s2 + $0x8] sm:$0xff]
    %v30 = vld [vmem:[%s2 + $0x10] sm:$0xff]
    %v31 = vld [vmem:[%s2 + $0x18] sm:$0xff]
    %33 = vset.pattern.permute.xlu0 0
    %34 = vperm.xlu0 %33, %v28
    %v35 = vpop.permute.xlu0 %34
    %38 = vset.pattern.permute.xlu0 0
    %39 = vperm.xlu0 %38, %v29
    %v40 = vpop.permute.xlu0 %39
    %43 = vset.pattern.permute.xlu0 0
    %44 = vperm.xlu0 %43, %v30
    %v45 = vpop.permute.xlu0 %44
    %48 = vset.pattern.permute.xlu0 0
    %49 = vperm.xlu0 %48, %v31
    %v50 = vpop.permute.xlu0 %49
    %vm52 = vcmask 130048
    %v54 = vsel %vm52, %v24, 0
    %v57 = vsel %vm52, %v25, 0
    %v60 = vsel %vm52, %v26, 0
    %v63 = vsel %vm52, %v27, 0
    %v66 = vsel %vm52, %v23, 0
    %68 = vmatprep.subr.mxu0 0.0
    %69 = vmatpush1.xpose.msra.mxu0 0.0
    %70 = vmatprep.subr.mxu0 0.0
    %71 = vmatpush1.xpose.msra.mxu0 0.0
    %72 = vmatprep.subr.mxu0 0.0
    %73 = vmatpush1.xpose.msra.mxu0 0.0
    %74 = vmatprep.subr.mxu0 0.0
    %75 = vmatpush1.xpose.msra.mxu0 0.0
    %76 = vmatprep.subr.mxu0 0.0
    %77 = vmatpush1.xpose.msra.mxu0 0.0
    %78 = vmatprep.subr.mxu0 0.0
    %79 = vmatpush1.xpose.msra.mxu0 0.0
    %80 = vmatprep.subr.mxu0 0.0
    %81 = vmatpush1.xpose.msra.mxu0 0.0
    %82 = vmatprep.subr.mxu0 0.0
    %83 = vmatpush1.xpose.msra.mxu0 0.0
    %84 = vmatprep.subr.mxu0 0.0
    %85 = vmatpush1.xpose.msra.mxu0 0.0
    %86 = vmatprep.subr.mxu0 0.0
    %87 = vmatpush1.xpose.msra.mxu0 0.0
    %88 = vmatprep.subr.mxu0 0.0
    %89 = vmatpush1.xpose.msra.mxu0 0.0
    %90 = vmatprep.subr.mxu0 0.0
    %91 = vmatpush1.xpose.msra.mxu0 0.0
    %92 = vmatprep.subr.mxu0 0.0
    %93 = vmatpush1.xpose.msra.mxu0 0.0
    %94 = vmatprep.subr.mxu0 0.0
    %95 = vmatpush1.xpose.msra.mxu0 0.0
    %96 = vmatprep.subr.mxu0 0.0
    %97 = vmatpush1.xpose.msra.mxu0 0.0
    %98 = vmatprep.subr.mxu0 0.0
    %v99 = vand.u32 %v66, 4294901760
    %100 = vmatpush1.xpose.msra.mxu0 %v99
    %101 = vmatprep.subr.mxu0 0.0
    %102 = vmatpush2.xpose.msra.mxu0 0.0
    %103 = vmatprep.subr.mxu0 0.0
    %104 = vmatpush2.xpose.msra.mxu0 0.0
    %105 = vmatprep.subr.mxu0 0.0
    %106 = vmatpush2.xpose.msra.mxu0 0.0
    %107 = vmatprep.subr.mxu0 0.0
    %108 = vmatpush2.xpose.msra.mxu0 0.0
    %109 = vmatprep.subr.mxu0 0.0
    %110 = vmatpush2.xpose.msra.mxu0 0.0
    %111 = vmatprep.subr.mxu0 0.0
    %112 = vmatpush2.xpose.msra.mxu0 0.0
    %113 = vmatprep.subr.mxu0 0.0
    %114 = vmatpush2.xpose.msra.mxu0 0.0
    %115 = vmatprep.subr.mxu0 0.0
    %116 = vmatpush2.xpose.msra.mxu0 0.0
    %117 = vmatprep.subr.mxu0 0.0
    %118 = vmatpush2.xpose.msra.mxu0 0.0
    %119 = vmatprep.subr.mxu0 0.0
    %120 = vmatpush2.xpose.msra.mxu0 0.0
    %121 = vmatprep.subr.mxu0 0.0
    %122 = vmatpush2.xpose.msra.mxu0 0.0
    %123 = vmatprep.subr.mxu0 0.0
    %124 = vmatpush2.xpose.msra.mxu0 0.0
    %125 = vmatprep.subr.mxu0 0.0
    %126 = vmatpush2.xpose.msra.mxu0 0.0
    %127 = vmatprep.subr.mxu0 0.0
    %128 = vmatpush2.xpose.msra.mxu0 0.0
    %129 = vmatprep.subr.mxu0 0.0
    %130 = vmatpush2.xpose.msra.mxu0 0.0
    %131 = vmatprep.subr.mxu0 0.0
    %132 = vmatpush2.xpose.msra.mxu0 0.0
    %133 = vmatprep.mubr.f32.mxu0 0.0
    %v134 = vand.u32 %v54, 4294901760
    %v135 = vsub.f32 %v54, %v134
    %v136 = vand.u32 %v135, 4294901760
    %v137 = vsub.f32 %v135, %v136
    %v138 = vand.u32 %v137, 4294901760
    %139 = vmatmul.mubr.f32.gmra.mxu0 %v138
    %v140 = vpop.f32.mrf.mxu0
    %v141 = vadd.f32 %v35, %v140
    %v142 = vpop.f32.mrf.mxu0
    %143 = vmatprep.mubr.f32.mxu0 0.0
    %v144 = vand.u32 %v57, 4294901760
    %v145 = vsub.f32 %v57, %v144
    %v146 = vand.u32 %v145, 4294901760
    %v147 = vsub.f32 %v145, %v146
    %v148 = vand.u32 %v147, 4294901760
    %149 = vmatmul.mubr.f32.gmra.mxu0 %v148
    %v150 = vpop.f32.mrf.mxu0
    %v151 = vadd.f32 %v40, %v150
    %v152 = vpop.f32.mrf.mxu0
    %153 = vmatprep.mubr.f32.mxu0 0.0
    %v154 = vand.u32 %v60, 4294901760
    %v155 = vsub.f32 %v60, %v154
    %v156 = vand.u32 %v155, 4294901760
    %v157 = vsub.f32 %v155, %v156
    %v158 = vand.u32 %v157, 4294901760
    %159 = vmatmul.mubr.f32.gmra.mxu0 %v158
    %v160 = vpop.f32.mrf.mxu0
    %v161 = vadd.f32 %v45, %v160
    %v162 = vpop.f32.mrf.mxu0
    %163 = vmatprep.mubr.f32.mxu0 0.0
    %v164 = vand.u32 %v63, 4294901760
    %v165 = vsub.f32 %v63, %v164
    %v166 = vand.u32 %v165, 4294901760
    %v167 = vsub.f32 %v165, %v166
    %v168 = vand.u32 %v167, 4294901760
    %169 = vmatmul.mubr.f32.gmra.mxu0 %v168
    %v170 = vpop.f32.mrf.mxu0
    %v171 = vadd.f32 %v50, %v170
    %v172 = vpop.f32.mrf.mxu0
    %173 = vdwg.mxu0
    %174 = vmatprep.subr.mxu0 0.0
    %175 = vmatpush1.xpose.msra.mxu0 0.0
    %176 = vmatprep.subr.mxu0 0.0
    %177 = vmatpush1.xpose.msra.mxu0 0.0
    %178 = vmatprep.subr.mxu0 0.0
    %179 = vmatpush1.xpose.msra.mxu0 0.0
    %180 = vmatprep.subr.mxu0 0.0
    %181 = vmatpush1.xpose.msra.mxu0 0.0
    %182 = vmatprep.subr.mxu0 0.0
    %183 = vmatpush1.xpose.msra.mxu0 0.0
    %184 = vmatprep.subr.mxu0 0.0
    %185 = vmatpush1.xpose.msra.mxu0 0.0
    %186 = vmatprep.subr.mxu0 0.0
    %187 = vmatpush1.xpose.msra.mxu0 0.0
    %188 = vmatprep.subr.mxu0 0.0
    %189 = vmatpush1.xpose.msra.mxu0 0.0
    %190 = vmatprep.subr.mxu0 0.0
    %191 = vmatpush1.xpose.msra.mxu0 0.0
    %192 = vmatprep.subr.mxu0 0.0
    %193 = vmatpush1.xpose.msra.mxu0 0.0
    %194 = vmatprep.subr.mxu0 0.0
    %195 = vmatpush1.xpose.msra.mxu0 0.0
    %196 = vmatprep.subr.mxu0 0.0
    %197 = vmatpush1.xpose.msra.mxu0 0.0
    %198 = vmatprep.subr.mxu0 0.0
    %199 = vmatpush1.xpose.msra.mxu0 0.0
    %200 = vmatprep.subr.mxu0 0.0
    %201 = vmatpush1.xpose.msra.mxu0 0.0
    %202 = vmatprep.subr.mxu0 0.0
    %203 = vmatpush1.xpose.msra.mxu0 0.0
    %204 = vmatprep.subr.mxu0 0.0
    %v205 = vand.u32 %v66, 4294901760
    %v206 = vsub.f32 %v66, %v205
    %v207 = vand.u32 %v206, 4294901760
    %v208 = vsub.f32 %v206, %v207
    %v209 = vand.u32 %v208, 4294901760
    %210 = vmatpush1.xpose.msra.mxu0 %v209
    %211 = vmatprep.subr.mxu0 0.0
    %212 = vmatpush2.xpose.msra.mxu0 0.0
    %213 = vmatprep.subr.mxu0 0.0
    %214 = vmatpush2.xpose.msra.mxu0 0.0
    %215 = vmatprep.subr.mxu0 0.0
    %216 = vmatpush2.xpose.msra.mxu0 0.0
    %217 = vmatprep.subr.mxu0 0.0
    %218 = vmatpush2.xpose.msra.mxu0 0.0
    %219 = vmatprep.subr.mxu0 0.0
    %220 = vmatpush2.xpose.msra.mxu0 0.0
    %221 = vmatprep.subr.mxu0 0.0
    %222 = vmatpush2.xpose.msra.mxu0 0.0
    %223 = vmatprep.subr.mxu0 0.0
    %224 = vmatpush2.xpose.msra.mxu0 0.0
    %225 = vmatprep.subr.mxu0 0.0
    %226 = vmatpush2.xpose.msra.mxu0 0.0
    %227 = vmatprep.subr.mxu0 0.0
    %228 = vmatpush2.xpose.msra.mxu0 0.0
    %229 = vmatprep.subr.mxu0 0.0
    %230 = vmatpush2.xpose.msra.mxu0 0.0
    %231 = vmatprep.subr.mxu0 0.0
    %232 = vmatpush2.xpose.msra.mxu0 0.0
    %233 = vmatprep.subr.mxu0 0.0
    %234 = vmatpush2.xpose.msra.mxu0 0.0
    %235 = vmatprep.subr.mxu0 0.0
    %236 = vmatpush2.xpose.msra.mxu0 0.0
    %237 = vmatprep.subr.mxu0 0.0
    %238 = vmatpush2.xpose.msra.mxu0 0.0
    %239 = vmatprep.subr.mxu0 0.0
    %240 = vmatpush2.xpose.msra.mxu0 0.0
    %241 = vmatprep.subr.mxu0 0.0
    %242 = vmatpush2.xpose.msra.mxu0 0.0
    %243 = vmatprep.mubr.f32.mxu0 0.0
    %v244 = vand.u32 %v54, 4294901760
    %245 = vmatmul.mubr.f32.gmra.mxu0 %v244
    %v246 = vpop.f32.mrf.mxu0
    %v247 = vadd.f32 %v141, %v246
    %v248 = vpop.f32.mrf.mxu0
    %249 = vmatprep.mubr.f32.mxu0 0.0
    %v250 = vand.u32 %v57, 4294901760
    %251 = vmatmul.mubr.f32.gmra.mxu0 %v250
    %v252 = vpop.f32.mrf.mxu0
    %v253 = vadd.f32 %v151, %v252
    %v254 = vpop.f32.mrf.mxu0
    %255 = vmatprep.mubr.f32.mxu0 0.0
    %v256 = vand.u32 %v60, 4294901760
    %257 = vmatmul.mubr.f32.gmra.mxu0 %v256
    %v258 = vpop.f32.mrf.mxu0
    %v259 = vadd.f32 %v161, %v258
    %v260 = vpop.f32.mrf.mxu0
    %261 = vmatprep.mubr.f32.mxu0 0.0
    %v262 = vand.u32 %v63, 4294901760
    %263 = vmatmul.mubr.f32.gmra.mxu0 %v262
    %v264 = vpop.f32.mrf.mxu0
    %v265 = vadd.f32 %v171, %v264
    %v266 = vpop.f32.mrf.mxu0
    %267 = vdwg.mxu0
    %268 = vmatprep.subr.mxu0 0.0
    %269 = vmatpush1.xpose.msra.mxu0 0.0
    %270 = vmatprep.subr.mxu0 0.0
    %271 = vmatpush1.xpose.msra.mxu0 0.0
    %272 = vmatprep.subr.mxu0 0.0
    %273 = vmatpush1.xpose.msra.mxu0 0.0
    %274 = vmatprep.subr.mxu0 0.0
    %275 = vmatpush1.xpose.msra.mxu0 0.0
    %276 = vmatprep.subr.mxu0 0.0
    %277 = vmatpush1.xpose.msra.mxu0 0.0
    %278 = vmatprep.subr.mxu0 0.0
    %279 = vmatpush1.xpose.msra.mxu0 0.0
    %280 = vmatprep.subr.mxu0 0.0
    %281 = vmatpush1.xpose.msra.mxu0 0.0
    %282 = vmatprep.subr.mxu0 0.0
    %283 = vmatpush1.xpose.msra.mxu0 0.0
    %284 = vmatprep.subr.mxu0 0.0
    %285 = vmatpush1.xpose.msra.mxu0 0.0
    %286 = vmatprep.subr.mxu0 0.0
    %287 = vmatpush1.xpose.msra.mxu0 0.0
    %288 = vmatprep.subr.mxu0 0.0
    %289 = vmatpush1.xpose.msra.mxu0 0.0
    %290 = vmatprep.subr.mxu0 0.0
    %291 = vmatpush1.xpose.msra.mxu0 0.0
    %292 = vmatprep.subr.mxu0 0.0
    %293 = vmatpush1.xpose.msra.mxu0 0.0
    %294 = vmatprep.subr.mxu0 0.0
    %295 = vmatpush1.xpose.msra.mxu0 0.0
    %296 = vmatprep.subr.mxu0 0.0
    %297 = vmatpush1.xpose.msra.mxu0 0.0
    %298 = vmatprep.subr.mxu0 0.0
    %v299 = vand.u32 %v66, 4294901760
    %v300 = vsub.f32 %v66, %v299
    %301 = vmatpush1.xpose.msra.mxu0 %v300
    %302 = vmatprep.subr.mxu0 0.0
    %303 = vmatpush2.xpose.msra.mxu0 0.0
    %304 = vmatprep.subr.mxu0 0.0
    %305 = vmatpush2.xpose.msra.mxu0 0.0
    %306 = vmatprep.subr.mxu0 0.0
    %307 = vmatpush2.xpose.msra.mxu0 0.0
    %308 = vmatprep.subr.mxu0 0.0
    %309 = vmatpush2.xpose.msra.mxu0 0.0
    %310 = vmatprep.subr.mxu0 0.0
    %311 = vmatpush2.xpose.msra.mxu0 0.0
    %312 = vmatprep.subr.mxu0 0.0
    %313 = vmatpush2.xpose.msra.mxu0 0.0
    %314 = vmatprep.subr.mxu0 0.0
    %315 = vmatpush2.xpose.msra.mxu0 0.0
    %316 = vmatprep.subr.mxu0 0.0
    %317 = vmatpush2.xpose.msra.mxu0 0.0
    %318 = vmatprep.subr.mxu0 0.0
    %319 = vmatpush2.xpose.msra.mxu0 0.0
    %320 = vmatprep.subr.mxu0 0.0
    %321 = vmatpush2.xpose.msra.mxu0 0.0
    %322 = vmatprep.subr.mxu0 0.0
    %323 = vmatpush2.xpose.msra.mxu0 0.0
    %324 = vmatprep.subr.mxu0 0.0
    %325 = vmatpush2.xpose.msra.mxu0 0.0
    %326 = vmatprep.subr.mxu0 0.0
    %327 = vmatpush2.xpose.msra.mxu0 0.0
    %328 = vmatprep.subr.mxu0 0.0
    %329 = vmatpush2.xpose.msra.mxu0 0.0
    %330 = vmatprep.subr.mxu0 0.0
    %331 = vmatpush2.xpose.msra.mxu0 0.0
    %332 = vmatprep.subr.mxu0 0.0
    %333 = vmatpush2.xpose.msra.mxu0 0.0
    %334 = vmatprep.mubr.f32.mxu0 0.0
    %v335 = vand.u32 %v54, 4294901760
    %v336 = vsub.f32 %v54, %v335
    %337 = vmatmul.mubr.f32.gmra.mxu0 %v336
    %v338 = vpop.f32.mrf.mxu0
    %v339 = vadd.f32 %v247, %v338
    %v340 = vpop.f32.mrf.mxu0
    %341 = vmatprep.mubr.f32.mxu0 0.0
    %v342 = vand.u32 %v57, 4294901760
    %v343 = vsub.f32 %v57, %v342
    %344 = vmatmul.mubr.f32.gmra.mxu0 %v343
    %v345 = vpop.f32.mrf.mxu0
    %v346 = vadd.f32 %v253, %v345
    %v347 = vpop.f32.mrf.mxu0
    %348 = vmatprep.mubr.f32.mxu0 0.0
    %v349 = vand.u32 %v60, 4294901760
    %v350 = vsub.f32 %v60, %v349
    %351 = vmatmul.mubr.f32.gmra.mxu0 %v350
    %v352 = vpop.f32.mrf.mxu0
    %v353 = vadd.f32 %v259, %v352
    %v354 = vpop.f32.mrf.mxu0
    %355 = vmatprep.mubr.f32.mxu0 0.0
    %v356 = vand.u32 %v63, 4294901760
    %v357 = vsub.f32 %v63, %v356
    %358 = vmatmul.mubr.f32.gmra.mxu0 %v357
    %v359 = vpop.f32.mrf.mxu0
    %v360 = vadd.f32 %v265, %v359
    %v361 = vpop.f32.mrf.mxu0
    %362 = vdwg.mxu0
    %363 = vmatprep.subr.mxu0 0.0
    %364 = vmatpush1.xpose.msra.mxu0 0.0
    %365 = vmatprep.subr.mxu0 0.0
    %366 = vmatpush1.xpose.msra.mxu0 0.0
    %367 = vmatprep.subr.mxu0 0.0
    %368 = vmatpush1.xpose.msra.mxu0 0.0
    %369 = vmatprep.subr.mxu0 0.0
    %370 = vmatpush1.xpose.msra.mxu0 0.0
    %371 = vmatprep.subr.mxu0 0.0
    %372 = vmatpush1.xpose.msra.mxu0 0.0
    %373 = vmatprep.subr.mxu0 0.0
    %374 = vmatpush1.xpose.msra.mxu0 0.0
    %375 = vmatprep.subr.mxu0 0.0
    %376 = vmatpush1.xpose.msra.mxu0 0.0
    %377 = vmatprep.subr.mxu0 0.0
    %378 = vmatpush1.xpose.msra.mxu0 0.0
    %379 = vmatprep.subr.mxu0 0.0
    %380 = vmatpush1.xpose.msra.mxu0 0.0
    %381 = vmatprep.subr.mxu0 0.0
    %382 = vmatpush1.xpose.msra.mxu0 0.0
    %383 = vmatprep.subr.mxu0 0.0
    %384 = vmatpush1.xpose.msra.mxu0 0.0
    %385 = vmatprep.subr.mxu0 0.0
    %386 = vmatpush1.xpose.msra.mxu0 0.0
    %387 = vmatprep.subr.mxu0 0.0
    %388 = vmatpush1.xpose.msra.mxu0 0.0
    %389 = vmatprep.subr.mxu0 0.0
    %390 = vmatpush1.xpose.msra.mxu0 0.0
    %391 = vmatprep.subr.mxu0 0.0
    %392 = vmatpush1.xpose.msra.mxu0 0.0
    %393 = vmatprep.subr.mxu0 0.0
    %v394 = vand.u32 %v66, 4294901760
    %395 = vmatpush1.xpose.msra.mxu0 %v394
    %396 = vmatprep.subr.mxu0 0.0
    %397 = vmatpush2.xpose.msra.mxu0 0.0
    %398 = vmatprep.subr.mxu0 0.0
    %399 = vmatpush2.xpose.msra.mxu0 0.0
    %400 = vmatprep.subr.mxu0 0.0
    %401 = vmatpush2.xpose.msra.mxu0 0.0
    %402 = vmatprep.subr.mxu0 0.0
    %403 = vmatpush2.xpose.msra.mxu0 0.0
    %404 = vmatprep.subr.mxu0 0.0
    %405 = vmatpush2.xpose.msra.mxu0 0.0
    %406 = vmatprep.subr.mxu0 0.0
    %407 = vmatpush2.xpose.msra.mxu0 0.0
    %408 = vmatprep.subr.mxu0 0.0
    %409 = vmatpush2.xpose.msra.mxu0 0.0
    %410 = vmatprep.subr.mxu0 0.0
    %411 = vmatpush2.xpose.msra.mxu0 0.0
    %412 = vmatprep.subr.mxu0 0.0
    %413 = vmatpush2.xpose.msra.mxu0 0.0
    %414 = vmatprep.subr.mxu0 0.0
    %415 = vmatpush2.xpose.msra.mxu0 0.0
    %416 = vmatprep.subr.mxu0 0.0
    %417 = vmatpush2.xpose.msra.mxu0 0.0
    %418 = vmatprep.subr.mxu0 0.0
    %419 = vmatpush2.xpose.msra.mxu0 0.0
    %420 = vmatprep.subr.mxu0 0.0
    %421 = vmatpush2.xpose.msra.mxu0 0.0
    %422 = vmatprep.subr.mxu0 0.0
    %423 = vmatpush2.xpose.msra.mxu0 0.0
    %424 = vmatprep.subr.mxu0 0.0
    %425 = vmatpush2.xpose.msra.mxu0 0.0
    %426 = vmatprep.subr.mxu0 0.0
    %427 = vmatpush2.xpose.msra.mxu0 0.0
    %428 = vmatprep.mubr.f32.mxu0 0.0
    %v429 = vand.u32 %v54, 4294901760
    %v430 = vsub.f32 %v54, %v429
    %v431 = vand.u32 %v430, 4294901760
    %432 = vmatmul.mubr.f32.gmra.mxu0 %v431
    %v433 = vpop.f32.mrf.mxu0
    %v434 = vadd.f32 %v339, %v433
    %v435 = vpop.f32.mrf.mxu0
    %436 = vmatprep.mubr.f32.mxu0 0.0
    %v437 = vand.u32 %v57, 4294901760
    %v438 = vsub.f32 %v57, %v437
    %v439 = vand.u32 %v438, 4294901760
    %440 = vmatmul.mubr.f32.gmra.mxu0 %v439
    %v441 = vpop.f32.mrf.mxu0
    %v442 = vadd.f32 %v346, %v441
    %v443 = vpop.f32.mrf.mxu0
    %444 = vmatprep.mubr.f32.mxu0 0.0
    %v445 = vand.u32 %v60, 4294901760
    %v446 = vsub.f32 %v60, %v445
    %v447 = vand.u32 %v446, 4294901760
    %448 = vmatmul.mubr.f32.gmra.mxu0 %v447
    %v449 = vpop.f32.mrf.mxu0
    %v450 = vadd.f32 %v353, %v449
    %v451 = vpop.f32.mrf.mxu0
    %452 = vmatprep.mubr.f32.mxu0 0.0
    %v453 = vand.u32 %v63, 4294901760
    %v454 = vsub.f32 %v63, %v453
    %v455 = vand.u32 %v454, 4294901760
    %456 = vmatmul.mubr.f32.gmra.mxu0 %v455
    %v457 = vpop.f32.mrf.mxu0
    %v458 = vadd.f32 %v360, %v457
    %v459 = vpop.f32.mrf.mxu0
    %460 = vdwg.mxu0
    %461 = vmatprep.subr.mxu0 0.0
    %462 = vmatpush1.xpose.msra.mxu0 0.0
    %463 = vmatprep.subr.mxu0 0.0
    %464 = vmatpush1.xpose.msra.mxu0 0.0
    %465 = vmatprep.subr.mxu0 0.0
    %466 = vmatpush1.xpose.msra.mxu0 0.0
    %467 = vmatprep.subr.mxu0 0.0
    %468 = vmatpush1.xpose.msra.mxu0 0.0
    %469 = vmatprep.subr.mxu0 0.0
    %470 = vmatpush1.xpose.msra.mxu0 0.0
    %471 = vmatprep.subr.mxu0 0.0
    %472 = vmatpush1.xpose.msra.mxu0 0.0
    %473 = vmatprep.subr.mxu0 0.0
    %474 = vmatpush1.xpose.msra.mxu0 0.0
    %475 = vmatprep.subr.mxu0 0.0
    %476 = vmatpush1.xpose.msra.mxu0 0.0
    %477 = vmatprep.subr.mxu0 0.0
    %478 = vmatpush1.xpose.msra.mxu0 0.0
    %479 = vmatprep.subr.mxu0 0.0
    %480 = vmatpush1.xpose.msra.mxu0 0.0
    %481 = vmatprep.subr.mxu0 0.0
    %482 = vmatpush1.xpose.msra.mxu0 0.0
    %483 = vmatprep.subr.mxu0 0.0
    %484 = vmatpush1.xpose.msra.mxu0 0.0
    %485 = vmatprep.subr.mxu0 0.0
    %486 = vmatpush1.xpose.msra.mxu0 0.0
    %487 = vmatprep.subr.mxu0 0.0
    %488 = vmatpush1.xpose.msra.mxu0 0.0
    %489 = vmatprep.subr.mxu0 0.0
    %490 = vmatpush1.xpose.msra.mxu0 0.0
    %491 = vmatprep.subr.mxu0 0.0
    %v492 = vand.u32 %v66, 4294901760
    %v493 = vsub.f32 %v66, %v492
    %v494 = vand.u32 %v493, 4294901760
    %495 = vmatpush1.xpose.msra.mxu0 %v494
    %496 = vmatprep.subr.mxu0 0.0
    %497 = vmatpush2.xpose.msra.mxu0 0.0
    %498 = vmatprep.subr.mxu0 0.0
    %499 = vmatpush2.xpose.msra.mxu0 0.0
    %500 = vmatprep.subr.mxu0 0.0
    %501 = vmatpush2.xpose.msra.mxu0 0.0
    %502 = vmatprep.subr.mxu0 0.0
    %503 = vmatpush2.xpose.msra.mxu0 0.0
    %504 = vmatprep.subr.mxu0 0.0
    %505 = vmatpush2.xpose.msra.mxu0 0.0
    %506 = vmatprep.subr.mxu0 0.0
    %507 = vmatpush2.xpose.msra.mxu0 0.0
    %508 = vmatprep.subr.mxu0 0.0
    %509 = vmatpush2.xpose.msra.mxu0 0.0
    %510 = vmatprep.subr.mxu0 0.0
    %511 = vmatpush2.xpose.msra.mxu0 0.0
    %512 = vmatprep.subr.mxu0 0.0
    %513 = vmatpush2.xpose.msra.mxu0 0.0
    %514 = vmatprep.subr.mxu0 0.0
    %515 = vmatpush2.xpose.msra.mxu0 0.0
    %516 = vmatprep.subr.mxu0 0.0
    %517 = vmatpush2.xpose.msra.mxu0 0.0
    %518 = vmatprep.subr.mxu0 0.0
    %519 = vmatpush2.xpose.msra.mxu0 0.0
    %520 = vmatprep.subr.mxu0 0.0
    %521 = vmatpush2.xpose.msra.mxu0 0.0
    %522 = vmatprep.subr.mxu0 0.0
    %523 = vmatpush2.xpose.msra.mxu0 0.0
    %524 = vmatprep.subr.mxu0 0.0
    %525 = vmatpush2.xpose.msra.mxu0 0.0
    %526 = vmatprep.subr.mxu0 0.0
    %527 = vmatpush2.xpose.msra.mxu0 0.0
    %528 = vmatprep.mubr.f32.mxu0 0.0
    %v529 = vand.u32 %v54, 4294901760
    %530 = vmatmul.mubr.f32.gmra.mxu0 %v529
    %v531 = vpop.f32.mrf.mxu0
    %v532 = vadd.f32 %v434, %v531
    %v533 = vpop.f32.mrf.mxu0
    %534 = vmatprep.mubr.f32.mxu0 0.0
    %v535 = vand.u32 %v57, 4294901760
    %536 = vmatmul.mubr.f32.gmra.mxu0 %v535
    %v537 = vpop.f32.mrf.mxu0
    %v538 = vadd.f32 %v442, %v537
    %v539 = vpop.f32.mrf.mxu0
    %540 = vmatprep.mubr.f32.mxu0 0.0
    %v541 = vand.u32 %v60, 4294901760
    %542 = vmatmul.mubr.f32.gmra.mxu0 %v541
    %v543 = vpop.f32.mrf.mxu0
    %v544 = vadd.f32 %v450, %v543
    %v545 = vpop.f32.mrf.mxu0
    %546 = vmatprep.mubr.f32.mxu0 0.0
    %v547 = vand.u32 %v63, 4294901760
    %548 = vmatmul.mubr.f32.gmra.mxu0 %v547
    %v549 = vpop.f32.mrf.mxu0
    %v550 = vadd.f32 %v458, %v549
    %v551 = vpop.f32.mrf.mxu0
    %552 = vdwg.mxu0
    %553 = vmatprep.subr.mxu0 0.0
    %554 = vmatpush1.xpose.msra.mxu0 0.0
    %555 = vmatprep.subr.mxu0 0.0
    %556 = vmatpush1.xpose.msra.mxu0 0.0
    %557 = vmatprep.subr.mxu0 0.0
    %558 = vmatpush1.xpose.msra.mxu0 0.0
    %559 = vmatprep.subr.mxu0 0.0
    %560 = vmatpush1.xpose.msra.mxu0 0.0
    %561 = vmatprep.subr.mxu0 0.0
    %562 = vmatpush1.xpose.msra.mxu0 0.0
    %563 = vmatprep.subr.mxu0 0.0
    %564 = vmatpush1.xpose.msra.mxu0 0.0
    %565 = vmatprep.subr.mxu0 0.0
    %566 = vmatpush1.xpose.msra.mxu0 0.0
    %567 = vmatprep.subr.mxu0 0.0
    %568 = vmatpush1.xpose.msra.mxu0 0.0
    %569 = vmatprep.subr.mxu0 0.0
    %570 = vmatpush1.xpose.msra.mxu0 0.0
    %571 = vmatprep.subr.mxu0 0.0
    %572 = vmatpush1.xpose.msra.mxu0 0.0
    %573 = vmatprep.subr.mxu0 0.0
    %574 = vmatpush1.xpose.msra.mxu0 0.0
    %575 = vmatprep.subr.mxu0 0.0
    %576 = vmatpush1.xpose.msra.mxu0 0.0
    %577 = vmatprep.subr.mxu0 0.0
    %578 = vmatpush1.xpose.msra.mxu0 0.0
    %579 = vmatprep.subr.mxu0 0.0
    %580 = vmatpush1.xpose.msra.mxu0 0.0
    %581 = vmatprep.subr.mxu0 0.0
    %582 = vmatpush1.xpose.msra.mxu0 0.0
    %583 = vmatprep.subr.mxu0 0.0
    %v584 = vand.u32 %v66, 4294901760
    %585 = vmatpush1.xpose.msra.mxu0 %v584
    %586 = vmatprep.subr.mxu0 0.0
    %587 = vmatpush2.xpose.msra.mxu0 0.0
    %588 = vmatprep.subr.mxu0 0.0
    %589 = vmatpush2.xpose.msra.mxu0 0.0
    %590 = vmatprep.subr.mxu0 0.0
    %591 = vmatpush2.xpose.msra.mxu0 0.0
    %592 = vmatprep.subr.mxu0 0.0
    %593 = vmatpush2.xpose.msra.mxu0 0.0
    %594 = vmatprep.subr.mxu0 0.0
    %595 = vmatpush2.xpose.msra.mxu0 0.0
    %596 = vmatprep.subr.mxu0 0.0
    %597 = vmatpush2.xpose.msra.mxu0 0.0
    %598 = vmatprep.subr.mxu0 0.0
    %599 = vmatpush2.xpose.msra.mxu0 0.0
    %600 = vmatprep.subr.mxu0 0.0
    %601 = vmatpush2.xpose.msra.mxu0 0.0
    %602 = vmatprep.subr.mxu0 0.0
    %603 = vmatpush2.xpose.msra.mxu0 0.0
    %604 = vmatprep.subr.mxu0 0.0
    %605 = vmatpush2.xpose.msra.mxu0 0.0
    %606 = vmatprep.subr.mxu0 0.0
    %607 = vmatpush2.xpose.msra.mxu0 0.0
    %608 = vmatprep.subr.mxu0 0.0
    %609 = vmatpush2.xpose.msra.mxu0 0.0
    %610 = vmatprep.subr.mxu0 0.0
    %611 = vmatpush2.xpose.msra.mxu0 0.0
    %612 = vmatprep.subr.mxu0 0.0
    %613 = vmatpush2.xpose.msra.mxu0 0.0
    %614 = vmatprep.subr.mxu0 0.0
    %615 = vmatpush2.xpose.msra.mxu0 0.0
    %616 = vmatprep.subr.mxu0 0.0
    %617 = vmatpush2.xpose.msra.mxu0 0.0
    %618 = vmatprep.mubr.f32.mxu0 0.0
    %v619 = vand.u32 %v54, 4294901760
    %620 = vmatmul.mubr.f32.gmra.mxu0 %v619
    %v621 = vpop.f32.mrf.mxu0
    %v622 = vadd.f32 %v532, %v621
    %v623 = vpop.f32.mrf.mxu0
    %624 = vmatprep.mubr.f32.mxu0 0.0
    %v625 = vand.u32 %v57, 4294901760
    %626 = vmatmul.mubr.f32.gmra.mxu0 %v625
    %v627 = vpop.f32.mrf.mxu0
    %v628 = vadd.f32 %v538, %v627
    %v629 = vpop.f32.mrf.mxu0
    %630 = vmatprep.mubr.f32.mxu0 0.0
    %v631 = vand.u32 %v60, 4294901760
    %632 = vmatmul.mubr.f32.gmra.mxu0 %v631
    %v633 = vpop.f32.mrf.mxu0
    %v634 = vadd.f32 %v544, %v633
    %v635 = vpop.f32.mrf.mxu0
    %636 = vmatprep.mubr.f32.mxu0 0.0
    %v637 = vand.u32 %v63, 4294901760
    %638 = vmatmul.mubr.f32.gmra.mxu0 %v637
    %v639 = vpop.f32.mrf.mxu0
    %v640 = vadd.f32 %v550, %v639
    %v641 = vpop.f32.mrf.mxu0
    %642 = vdwg.mxu0
    %v643 = vmax.f32 %v622, 0.0
    %v644 = vmax.f32 %v628, 0.0
    %v645 = vmax.f32 %v634, 0.0
    %v646 = vmax.f32 %v640, 0.0
    %v647 = vld [vmem:[%s3] sm:$0x1]
    %v648 = vld [vmem:[#allocation2] sm:$0x1]
    %650 = vset.pattern.permute.xlu0 0
    %651 = vperm.xlu0 %650, %v648
    %v652 = vpop.permute.xlu0 %651
    %v654 = vlaneseq
    %v655 = vshrl.u32 %v654, 7
    %v656 = vsub.s32 0, %v655
    %v657 = vrot.slane %v652, %v656
    %vm658 = vcmask 261120
    %v660 = vsel %vm658, %v647, 0
    %662 = vmatprep.subr.mxu0 0.0
    %663 = vmatpush1.msra.mxu0 0.0
    %664 = vmatprep.subr.mxu0 0.0
    %665 = vmatpush1.msra.mxu0 0.0
    %666 = vmatprep.subr.mxu0 0.0
    %667 = vmatpush1.msra.mxu0 0.0
    %668 = vmatprep.subr.mxu0 0.0
    %669 = vmatpush1.msra.mxu0 0.0
    %670 = vmatprep.subr.mxu0 0.0
    %671 = vmatpush1.msra.mxu0 0.0
    %672 = vmatprep.subr.mxu0 0.0
    %673 = vmatpush1.msra.mxu0 0.0
    %674 = vmatprep.subr.mxu0 0.0
    %675 = vmatpush1.msra.mxu0 0.0
    %676 = vmatprep.subr.mxu0 0.0
    %677 = vmatpush1.msra.mxu0 0.0
    %678 = vmatprep.subr.mxu0 0.0
    %679 = vmatpush1.msra.mxu0 0.0
    %680 = vmatprep.subr.mxu0 0.0
    %681 = vmatpush1.msra.mxu0 0.0
    %682 = vmatprep.subr.mxu0 0.0
    %683 = vmatpush1.msra.mxu0 0.0
    %684 = vmatprep.subr.mxu0 0.0
    %685 = vmatpush1.msra.mxu0 0.0
    %686 = vmatprep.subr.mxu0 0.0
    %v687 = vand.u32 %v646, 4294901760
    %688 = vmatpush1.msra.mxu0 %v687
    %689 = vmatprep.subr.mxu0 0.0
    %v690 = vand.u32 %v645, 4294901760
    %691 = vmatpush1.msra.mxu0 %v690
    %692 = vmatprep.subr.mxu0 0.0
    %v693 = vand.u32 %v644, 4294901760
    %694 = vmatpush1.msra.mxu0 %v693
    %695 = vmatprep.subr.mxu0 0.0
    %v696 = vand.u32 %v643, 4294901760
    %697 = vmatpush1.msra.mxu0 %v696
    %698 = vmatprep.subr.mxu0 0.0
    %699 = vmatpush2.msra.mxu0 0.0
    %700 = vmatprep.subr.mxu0 0.0
    %701 = vmatpush2.msra.mxu0 0.0
    %702 = vmatprep.subr.mxu0 0.0
    %703 = vmatpush2.msra.mxu0 0.0
    %704 = vmatprep.subr.mxu0 0.0
    %705 = vmatpush2.msra.mxu0 0.0
    %706 = vmatprep.subr.mxu0 0.0
    %707 = vmatpush2.msra.mxu0 0.0
    %708 = vmatprep.subr.mxu0 0.0
    %709 = vmatpush2.msra.mxu0 0.0
    %710 = vmatprep.subr.mxu0 0.0
    %711 = vmatpush2.msra.mxu0 0.0
    %712 = vmatprep.subr.mxu0 0.0
    %713 = vmatpush2.msra.mxu0 0.0
    %714 = vmatprep.subr.mxu0 0.0
    %715 = vmatpush2.msra.mxu0 0.0
    %716 = vmatprep.subr.mxu0 0.0
    %717 = vmatpush2.msra.mxu0 0.0
    %718 = vmatprep.subr.mxu0 0.0
    %719 = vmatpush2.msra.mxu0 0.0
    %720 = vmatprep.subr.mxu0 0.0
    %721 = vmatpush2.msra.mxu0 0.0
    %722 = vmatprep.subr.mxu0 0.0
    %723 = vmatpush2.msra.mxu0 0.0
    %724 = vmatprep.subr.mxu0 0.0
    %725 = vmatpush2.msra.mxu0 0.0
    %726 = vmatprep.subr.mxu0 0.0
    %727 = vmatpush2.msra.mxu0 0.0
    %728 = vmatprep.subr.mxu0 0.0
    %729 = vmatpush2.msra.mxu0 0.0
    %730 = vmatprep.mubr.f32.mxu0 0.0
    %v731 = vand.u32 %v660, 4294901760
    %v732 = vsub.f32 %v660, %v731
    %v733 = vand.u32 %v732, 4294901760
    %v734 = vsub.f32 %v732, %v733
    %v735 = vand.u32 %v734, 4294901760
    %736 = vmatmul.mubr.f32.gmra.mxu0 %v735
    %v737 = vpop.f32.mrf.mxu0
    %v738 = vadd.f32 %v657, %v737
    %v739 = vpop.f32.mrf.mxu0
    %740 = vdwg.mxu0
    %741 = vmatprep.subr.mxu0 0.0
    %742 = vmatpush1.msra.mxu0 0.0
    %743 = vmatprep.subr.mxu0 0.0
    %744 = vmatpush1.msra.mxu0 0.0
    %745 = vmatprep.subr.mxu0 0.0
    %746 = vmatpush1.msra.mxu0 0.0
    %747 = vmatprep.subr.mxu0 0.0
    %748 = vmatpush1.msra.mxu0 0.0
    %749 = vmatprep.subr.mxu0 0.0
    %750 = vmatpush1.msra.mxu0 0.0
    %751 = vmatprep.subr.mxu0 0.0
    %752 = vmatpush1.msra.mxu0 0.0
    %753 = vmatprep.subr.mxu0 0.0
    %754 = vmatpush1.msra.mxu0 0.0
    %755 = vmatprep.subr.mxu0 0.0
    %756 = vmatpush1.msra.mxu0 0.0
    %757 = vmatprep.subr.mxu0 0.0
    %758 = vmatpush1.msra.mxu0 0.0
    %759 = vmatprep.subr.mxu0 0.0
    %760 = vmatpush1.msra.mxu0 0.0
    %761 = vmatprep.subr.mxu0 0.0
    %762 = vmatpush1.msra.mxu0 0.0
    %763 = vmatprep.subr.mxu0 0.0
    %764 = vmatpush1.msra.mxu0 0.0
    %765 = vmatprep.subr.mxu0 0.0
    %v766 = vand.u32 %v646, 4294901760
    %v767 = vsub.f32 %v646, %v766
    %v768 = vand.u32 %v767, 4294901760
    %v769 = vsub.f32 %v767, %v768
    %v770 = vand.u32 %v769, 4294901760
    %771 = vmatpush1.msra.mxu0 %v770
    %772 = vmatprep.subr.mxu0 0.0
    %v773 = vand.u32 %v645, 4294901760
    %v774 = vsub.f32 %v645, %v773
    %v775 = vand.u32 %v774, 4294901760
    %v776 = vsub.f32 %v774, %v775
    %v777 = vand.u32 %v776, 4294901760
    %778 = vmatpush1.msra.mxu0 %v777
    %779 = vmatprep.subr.mxu0 0.0
    %v780 = vand.u32 %v644, 4294901760
    %v781 = vsub.f32 %v644, %v780
    %v782 = vand.u32 %v781, 4294901760
    %v783 = vsub.f32 %v781, %v782
    %v784 = vand.u32 %v783, 4294901760
    %785 = vmatpush1.msra.mxu0 %v784
    %786 = vmatprep.subr.mxu0 0.0
    %v787 = vand.u32 %v643, 4294901760
    %v788 = vsub.f32 %v643, %v787
    %v789 = vand.u32 %v788, 4294901760
    %v790 = vsub.f32 %v788, %v789
    %v791 = vand.u32 %v790, 4294901760
    %792 = vmatpush1.msra.mxu0 %v791
    %793 = vmatprep.subr.mxu0 0.0
    %794 = vmatpush2.msra.mxu0 0.0
    %795 = vmatprep.subr.mxu0 0.0
    %796 = vmatpush2.msra.mxu0 0.0
    %797 = vmatprep.subr.mxu0 0.0
    %798 = vmatpush2.msra.mxu0 0.0
    %799 = vmatprep.subr.mxu0 0.0
    %800 = vmatpush2.msra.mxu0 0.0
    %801 = vmatprep.subr.mxu0 0.0
    %802 = vmatpush2.msra.mxu0 0.0
    %803 = vmatprep.subr.mxu0 0.0
    %804 = vmatpush2.msra.mxu0 0.0
    %805 = vmatprep.subr.mxu0 0.0
    %806 = vmatpush2.msra.mxu0 0.0
    %807 = vmatprep.subr.mxu0 0.0
    %808 = vmatpush2.msra.mxu0 0.0
    %809 = vmatprep.subr.mxu0 0.0
    %810 = vmatpush2.msra.mxu0 0.0
    %811 = vmatprep.subr.mxu0 0.0
    %812 = vmatpush2.msra.mxu0 0.0
    %813 = vmatprep.subr.mxu0 0.0
    %814 = vmatpush2.msra.mxu0 0.0
    %815 = vmatprep.subr.mxu0 0.0
    %816 = vmatpush2.msra.mxu0 0.0
    %817 = vmatprep.subr.mxu0 0.0
    %818 = vmatpush2.msra.mxu0 0.0
    %819 = vmatprep.subr.mxu0 0.0
    %820 = vmatpush2.msra.mxu0 0.0
    %821 = vmatprep.subr.mxu0 0.0
    %822 = vmatpush2.msra.mxu0 0.0
    %823 = vmatprep.subr.mxu0 0.0
    %824 = vmatpush2.msra.mxu0 0.0
    %825 = vmatprep.mubr.f32.mxu0 0.0
    %v826 = vand.u32 %v660, 4294901760
    %827 = vmatmul.mubr.f32.gmra.mxu0 %v826
    %v828 = vpop.f32.mrf.mxu0
    %v829 = vadd.f32 %v738, %v828
    %v830 = vpop.f32.mrf.mxu0
    %831 = vdwg.mxu0
    %832 = vmatprep.subr.mxu0 0.0
    %833 = vmatpush1.msra.mxu0 0.0
    %834 = vmatprep.subr.mxu0 0.0
    %835 = vmatpush1.msra.mxu0 0.0
    %836 = vmatprep.subr.mxu0 0.0
    %837 = vmatpush1.msra.mxu0 0.0
    %838 = vmatprep.subr.mxu0 0.0
    %839 = vmatpush1.msra.mxu0 0.0
    %840 = vmatprep.subr.mxu0 0.0
    %841 = vmatpush1.msra.mxu0 0.0
    %842 = vmatprep.subr.mxu0 0.0
    %843 = vmatpush1.msra.mxu0 0.0
    %844 = vmatprep.subr.mxu0 0.0
    %845 = vmatpush1.msra.mxu0 0.0
    %846 = vmatprep.subr.mxu0 0.0
    %847 = vmatpush1.msra.mxu0 0.0
    %848 = vmatprep.subr.mxu0 0.0
    %849 = vmatpush1.msra.mxu0 0.0
    %850 = vmatprep.subr.mxu0 0.0
    %851 = vmatpush1.msra.mxu0 0.0
    %852 = vmatprep.subr.mxu0 0.0
    %853 = vmatpush1.msra.mxu0 0.0
    %854 = vmatprep.subr.mxu0 0.0
    %855 = vmatpush1.msra.mxu0 0.0
    %856 = vmatprep.subr.mxu0 0.0
    %v857 = vand.u32 %v646, 4294901760
    %v858 = vsub.f32 %v646, %v857
    %859 = vmatpush1.msra.mxu0 %v858
    %860 = vmatprep.subr.mxu0 0.0
    %v861 = vand.u32 %v645, 4294901760
    %v862 = vsub.f32 %v645, %v861
    %863 = vmatpush1.msra.mxu0 %v862
    %864 = vmatprep.subr.mxu0 0.0
    %v865 = vand.u32 %v644, 4294901760
    %v866 = vsub.f32 %v644, %v865
    %867 = vmatpush1.msra.mxu0 %v866
    %868 = vmatprep.subr.mxu0 0.0
    %v869 = vand.u32 %v643, 4294901760
    %v870 = vsub.f32 %v643, %v869
    %871 = vmatpush1.msra.mxu0 %v870
    %872 = vmatprep.subr.mxu0 0.0
    %873 = vmatpush2.msra.mxu0 0.0
    %874 = vmatprep.subr.mxu0 0.0
    %875 = vmatpush2.msra.mxu0 0.0
    %876 = vmatprep.subr.mxu0 0.0
    %877 = vmatpush2.msra.mxu0 0.0
    %878 = vmatprep.subr.mxu0 0.0
    %879 = vmatpush2.msra.mxu0 0.0
    %880 = vmatprep.subr.mxu0 0.0
    %881 = vmatpush2.msra.mxu0 0.0
    %882 = vmatprep.subr.mxu0 0.0
    %883 = vmatpush2.msra.mxu0 0.0
    %884 = vmatprep.subr.mxu0 0.0
    %885 = vmatpush2.msra.mxu0 0.0
    %886 = vmatprep.subr.mxu0 0.0
    %887 = vmatpush2.msra.mxu0 0.0
    %888 = vmatprep.subr.mxu0 0.0
    %889 = vmatpush2.msra.mxu0 0.0
    %890 = vmatprep.subr.mxu0 0.0
    %891 = vmatpush2.msra.mxu0 0.0
    %892 = vmatprep.subr.mxu0 0.0
    %893 = vmatpush2.msra.mxu0 0.0
    %894 = vmatprep.subr.mxu0 0.0
    %895 = vmatpush2.msra.mxu0 0.0
    %896 = vmatprep.subr.mxu0 0.0
    %897 = vmatpush2.msra.mxu0 0.0
    %898 = vmatprep.subr.mxu0 0.0
    %899 = vmatpush2.msra.mxu0 0.0
    %900 = vmatprep.subr.mxu0 0.0
    %901 = vmatpush2.msra.mxu0 0.0
    %902 = vmatprep.subr.mxu0 0.0
    %903 = vmatpush2.msra.mxu0 0.0
    %904 = vmatprep.mubr.f32.mxu0 0.0
    %v905 = vand.u32 %v660, 4294901760
    %v906 = vsub.f32 %v660, %v905
    %907 = vmatmul.mubr.f32.gmra.mxu0 %v906
    %v908 = vpop.f32.mrf.mxu0
    %v909 = vadd.f32 %v829, %v908
    %v910 = vpop.f32.mrf.mxu0
    %911 = vdwg.mxu0
    %912 = vmatprep.subr.mxu0 0.0
    %913 = vmatpush1.msra.mxu0 0.0
    %914 = vmatprep.subr.mxu0 0.0
    %915 = vmatpush1.msra.mxu0 0.0
    %916 = vmatprep.subr.mxu0 0.0
    %917 = vmatpush1.msra.mxu0 0.0
    %918 = vmatprep.subr.mxu0 0.0
    %919 = vmatpush1.msra.mxu0 0.0
    %920 = vmatprep.subr.mxu0 0.0
    %921 = vmatpush1.msra.mxu0 0.0
    %922 = vmatprep.subr.mxu0 0.0
    %923 = vmatpush1.msra.mxu0 0.0
    %924 = vmatprep.subr.mxu0 0.0
    %925 = vmatpush1.msra.mxu0 0.0
    %926 = vmatprep.subr.mxu0 0.0
    %927 = vmatpush1.msra.mxu0 0.0
    %928 = vmatprep.subr.mxu0 0.0
    %929 = vmatpush1.msra.mxu0 0.0
    %930 = vmatprep.subr.mxu0 0.0
    %931 = vmatpush1.msra.mxu0 0.0
    %932 = vmatprep.subr.mxu0 0.0
    %933 = vmatpush1.msra.mxu0 0.0
    %934 = vmatprep.subr.mxu0 0.0
    %935 = vmatpush1.msra.mxu0 0.0
    %936 = vmatprep.subr.mxu0 0.0
    %v937 = vand.u32 %v646, 4294901760
    %938 = vmatpush1.msra.mxu0 %v937
    %939 = vmatprep.subr.mxu0 0.0
    %v940 = vand.u32 %v645, 4294901760
    %941 = vmatpush1.msra.mxu0 %v940
    %942 = vmatprep.subr.mxu0 0.0
    %v943 = vand.u32 %v644, 4294901760
    %944 = vmatpush1.msra.mxu0 %v943
    %945 = vmatprep.subr.mxu0 0.0
    %v946 = vand.u32 %v643, 4294901760
    %947 = vmatpush1.msra.mxu0 %v946
    %948 = vmatprep.subr.mxu0 0.0
    %949 = vmatpush2.msra.mxu0 0.0
    %950 = vmatprep.subr.mxu0 0.0
    %951 = vmatpush2.msra.mxu0 0.0
    %952 = vmatprep.subr.mxu0 0.0
    %953 = vmatpush2.msra.mxu0 0.0
    %954 = vmatprep.subr.mxu0 0.0
    %955 = vmatpush2.msra.mxu0 0.0
    %956 = vmatprep.subr.mxu0 0.0
    %957 = vmatpush2.msra.mxu0 0.0
    %958 = vmatprep.subr.mxu0 0.0
    %959 = vmatpush2.msra.mxu0 0.0
    %960 = vmatprep.subr.mxu0 0.0
    %961 = vmatpush2.msra.mxu0 0.0
    %962 = vmatprep.subr.mxu0 0.0
    %963 = vmatpush2.msra.mxu0 0.0
    %964 = vmatprep.subr.mxu0 0.0
    %965 = vmatpush2.msra.mxu0 0.0
    %966 = vmatprep.subr.mxu0 0.0
    %967 = vmatpush2.msra.mxu0 0.0
    %968 = vmatprep.subr.mxu0 0.0
    %969 = vmatpush2.msra.mxu0 0.0
    %970 = vmatprep.subr.mxu0 0.0
    %971 = vmatpush2.msra.mxu0 0.0
    %972 = vmatprep.subr.mxu0 0.0
    %973 = vmatpush2.msra.mxu0 0.0
    %974 = vmatprep.subr.mxu0 0.0
    %975 = vmatpush2.msra.mxu0 0.0
    %976 = vmatprep.subr.mxu0 0.0
    %977 = vmatpush2.msra.mxu0 0.0
    %978 = vmatprep.subr.mxu0 0.0
    %979 = vmatpush2.msra.mxu0 0.0
    %980 = vmatprep.mubr.f32.mxu0 0.0
    %v981 = vand.u32 %v660, 4294901760
    %v982 = vsub.f32 %v660, %v981
    %v983 = vand.u32 %v982, 4294901760
    %984 = vmatmul.mubr.f32.gmra.mxu0 %v983
    %v985 = vpop.f32.mrf.mxu0
    %v986 = vadd.f32 %v909, %v985
    %v987 = vpop.f32.mrf.mxu0
    %988 = vdwg.mxu0
    %989 = vmatprep.subr.mxu0 0.0
    %990 = vmatpush1.msra.mxu0 0.0
    %991 = vmatprep.subr.mxu0 0.0
    %992 = vmatpush1.msra.mxu0 0.0
    %993 = vmatprep.subr.mxu0 0.0
    %994 = vmatpush1.msra.mxu0 0.0
    %995 = vmatprep.subr.mxu0 0.0
    %996 = vmatpush1.msra.mxu0 0.0
    %997 = vmatprep.subr.mxu0 0.0
    %998 = vmatpush1.msra.mxu0 0.0
    %999 = vmatprep.subr.mxu0 0.0
    %1000 = vmatpush1.msra.mxu0 0.0
    %1001 = vmatprep.subr.mxu0 0.0
    %1002 = vmatpush1.msra.mxu0 0.0
    %1003 = vmatprep.subr.mxu0 0.0
    %1004 = vmatpush1.msra.mxu0 0.0
    %1005 = vmatprep.subr.mxu0 0.0
    %1006 = vmatpush1.msra.mxu0 0.0
    %1007 = vmatprep.subr.mxu0 0.0
    %1008 = vmatpush1.msra.mxu0 0.0
    %1009 = vmatprep.subr.mxu0 0.0
    %1010 = vmatpush1.msra.mxu0 0.0
    %1011 = vmatprep.subr.mxu0 0.0
    %1012 = vmatpush1.msra.mxu0 0.0
    %1013 = vmatprep.subr.mxu0 0.0
    %v1014 = vand.u32 %v646, 4294901760
    %v1015 = vsub.f32 %v646, %v1014
    %v1016 = vand.u32 %v1015, 4294901760
    %1017 = vmatpush1.msra.mxu0 %v1016
    %1018 = vmatprep.subr.mxu0 0.0
    %v1019 = vand.u32 %v645, 4294901760
    %v1020 = vsub.f32 %v645, %v1019
    %v1021 = vand.u32 %v1020, 4294901760
    %1022 = vmatpush1.msra.mxu0 %v1021
    %1023 = vmatprep.subr.mxu0 0.0
    %v1024 = vand.u32 %v644, 4294901760
    %v1025 = vsub.f32 %v644, %v1024
    %v1026 = vand.u32 %v1025, 4294901760
    %1027 = vmatpush1.msra.mxu0 %v1026
    %1028 = vmatprep.subr.mxu0 0.0
    %v1029 = vand.u32 %v643, 4294901760
    %v1030 = vsub.f32 %v643, %v1029
    %v1031 = vand.u32 %v1030, 4294901760
    %1032 = vmatpush1.msra.mxu0 %v1031
    %1033 = vmatprep.subr.mxu0 0.0
    %1034 = vmatpush2.msra.mxu0 0.0
    %1035 = vmatprep.subr.mxu0 0.0
    %1036 = vmatpush2.msra.mxu0 0.0
    %1037 = vmatprep.subr.mxu0 0.0
    %1038 = vmatpush2.msra.mxu0 0.0
    %1039 = vmatprep.subr.mxu0 0.0
    %1040 = vmatpush2.msra.mxu0 0.0
    %1041 = vmatprep.subr.mxu0 0.0
    %1042 = vmatpush2.msra.mxu0 0.0
    %1043 = vmatprep.subr.mxu0 0.0
    %1044 = vmatpush2.msra.mxu0 0.0
    %1045 = vmatprep.subr.mxu0 0.0
    %1046 = vmatpush2.msra.mxu0 0.0
    %1047 = vmatprep.subr.mxu0 0.0
    %1048 = vmatpush2.msra.mxu0 0.0
    %1049 = vmatprep.subr.mxu0 0.0
    %1050 = vmatpush2.msra.mxu0 0.0
    %1051 = vmatprep.subr.mxu0 0.0
    %1052 = vmatpush2.msra.mxu0 0.0
    %1053 = vmatprep.subr.mxu0 0.0
    %1054 = vmatpush2.msra.mxu0 0.0
    %1055 = vmatprep.subr.mxu0 0.0
    %1056 = vmatpush2.msra.mxu0 0.0
    %1057 = vmatprep.subr.mxu0 0.0
    %1058 = vmatpush2.msra.mxu0 0.0
    %1059 = vmatprep.subr.mxu0 0.0
    %1060 = vmatpush2.msra.mxu0 0.0
    %1061 = vmatprep.subr.mxu0 0.0
    %1062 = vmatpush2.msra.mxu0 0.0
    %1063 = vmatprep.subr.mxu0 0.0
    %1064 = vmatpush2.msra.mxu0 0.0
    %1065 = vmatprep.mubr.f32.mxu0 0.0
    %v1066 = vand.u32 %v660, 4294901760
    %1067 = vmatmul.mubr.f32.gmra.mxu0 %v1066
    %v1068 = vpop.f32.mrf.mxu0
    %v1069 = vadd.f32 %v986, %v1068
    %v1070 = vpop.f32.mrf.mxu0
    %1071 = vdwg.mxu0
    %1072 = vmatprep.subr.mxu0 0.0
    %1073 = vmatpush1.msra.mxu0 0.0
    %1074 = vmatprep.subr.mxu0 0.0
    %1075 = vmatpush1.msra.mxu0 0.0
    %1076 = vmatprep.subr.mxu0 0.0
    %1077 = vmatpush1.msra.mxu0 0.0
    %1078 = vmatprep.subr.mxu0 0.0
    %1079 = vmatpush1.msra.mxu0 0.0
    %1080 = vmatprep.subr.mxu0 0.0
    %1081 = vmatpush1.msra.mxu0 0.0
    %1082 = vmatprep.subr.mxu0 0.0
    %1083 = vmatpush1.msra.mxu0 0.0
    %1084 = vmatprep.subr.mxu0 0.0
    %1085 = vmatpush1.msra.mxu0 0.0
    %1086 = vmatprep.subr.mxu0 0.0
    %1087 = vmatpush1.msra.mxu0 0.0
    %1088 = vmatprep.subr.mxu0 0.0
    %1089 = vmatpush1.msra.mxu0 0.0
    %1090 = vmatprep.subr.mxu0 0.0
    %1091 = vmatpush1.msra.mxu0 0.0
    %1092 = vmatprep.subr.mxu0 0.0
    %1093 = vmatpush1.msra.mxu0 0.0
    %1094 = vmatprep.subr.mxu0 0.0
    %1095 = vmatpush1.msra.mxu0 0.0
    %1096 = vmatprep.subr.mxu0 0.0
    %v1097 = vand.u32 %v646, 4294901760
    %1098 = vmatpush1.msra.mxu0 %v1097
    %1099 = vmatprep.subr.mxu0 0.0
    %v1100 = vand.u32 %v645, 4294901760
    %1101 = vmatpush1.msra.mxu0 %v1100
    %1102 = vmatprep.subr.mxu0 0.0
    %v1103 = vand.u32 %v644, 4294901760
    %1104 = vmatpush1.msra.mxu0 %v1103
    %1105 = vmatprep.subr.mxu0 0.0
    %v1106 = vand.u32 %v643, 4294901760
    %1107 = vmatpush1.msra.mxu0 %v1106
    %1108 = vmatprep.subr.mxu0 0.0
    %1109 = vmatpush2.msra.mxu0 0.0
    %1110 = vmatprep.subr.mxu0 0.0
    %1111 = vmatpush2.msra.mxu0 0.0
    %1112 = vmatprep.subr.mxu0 0.0
    %1113 = vmatpush2.msra.mxu0 0.0
    %1114 = vmatprep.subr.mxu0 0.0
    %1115 = vmatpush2.msra.mxu0 0.0
    %1116 = vmatprep.subr.mxu0 0.0
    %1117 = vmatpush2.msra.mxu0 0.0
    %1118 = vmatprep.subr.mxu0 0.0
    %1119 = vmatpush2.msra.mxu0 0.0
    %1120 = vmatprep.subr.mxu0 0.0
    %1121 = vmatpush2.msra.mxu0 0.0
    %1122 = vmatprep.subr.mxu0 0.0
    %1123 = vmatpush2.msra.mxu0 0.0
    %1124 = vmatprep.subr.mxu0 0.0
    %1125 = vmatpush2.msra.mxu0 0.0
    %1126 = vmatprep.subr.mxu0 0.0
    %1127 = vmatpush2.msra.mxu0 0.0
    %1128 = vmatprep.subr.mxu0 0.0
    %1129 = vmatpush2.msra.mxu0 0.0
    %1130 = vmatprep.subr.mxu0 0.0
    %1131 = vmatpush2.msra.mxu0 0.0
    %1132 = vmatprep.subr.mxu0 0.0
    %1133 = vmatpush2.msra.mxu0 0.0
    %1134 = vmatprep.subr.mxu0 0.0
    %1135 = vmatpush2.msra.mxu0 0.0
    %1136 = vmatprep.subr.mxu0 0.0
    %1137 = vmatpush2.msra.mxu0 0.0
    %1138 = vmatprep.subr.mxu0 0.0
    %1139 = vmatpush2.msra.mxu0 0.0
    %1140 = vmatprep.mubr.f32.mxu0 0.0
    %v1141 = vand.u32 %v660, 4294901760
    %1142 = vmatmul.mubr.f32.gmra.mxu0 %v1141
    %v1143 = vpop.f32.mrf.mxu0
    %v1144 = vadd.f32 %v1069, %v1143
    %v1145 = vpop.f32.mrf.mxu0
    %1146 = vdwg.mxu0
    %v1147 = vmul.f32 %v1144, 1.442695
    %v1148 = vpow.pop %v1147
    %vm1149 = vcmask 57344
    %1150 = vst.msk [vmem:[#allocation3] sm:$0x1] %vm1149, %v1148
    // Predicated region
    $region22: #{tpu_custom_call.1} parent=1 // pred_check
      _
    $region23: #{tpu_custom_call.1} parent=1 // pred_check_branch
      %1152 = sbr.rel (0) target = $region25
    $region24: #{tpu_custom_call.1} parent=1 // pred_region
      %s1154 = ssub.s32 16, 16
      %1155 = vsyncadd [#allocation4], %s1154
      %s1157 = sshll.u32 [#allocation3], 4
      %s1158 = int_to_ptr.vmem [resolvable:$true] %s1157
      %1160 = dma.vmem_to_hbm [thread:$0]  %s1158, 16, %s5, [#allocation4]
    $region25: #{tpu_custom_call.1} parent=1 // pred_fallthru
      _
    // Predicated region
    $region26: #{tpu_custom_call.1} parent=1 // pred_check
      _
    $region27: #{tpu_custom_call.1} parent=1 // pred_check_branch
      %1162 = sbr.rel (0) target = $region29
    $region28: #{tpu_custom_call.1} parent=1 // pred_region
      %1163 = dma.done [#allocation4], 16
    $region29: #{tpu_custom_call.1} parent=1 // pred_fallthru
      _
    %1164 = vsyncpa [#allocation4], 1

</llo_original>
